<compile_context>
chip_gen: v7x
topology: tpu7x:2x2x1
jax: 0.10.0
libtpu: 0.0.40
codegen_flags: <defaults>
</compile_context>

<pallas_src>
import jax
import jax.numpy as jnp
from jax.experimental import pallas as pl
from jax.experimental.pallas import tpu as pltpu


def _basic_kernel(x_ref, h_ref, accum_ref, sub_ref):
    x = x_ref[...]
    h = h_ref[...]
    accum_ref[...] = x + h   # accum(x, h)
    sub_ref[...] = x - h     # sub_accum(x, h)


def _round_up(v, m):
    return ((v + m - 1) // m) * m


def _cdiv(a, b):
    return -(-a // b)


# Widths tried for the full lane-dense flatten (contiguous reshape is free).
_FLATTEN_WIDTHS = (4096, 2048, 1024, 512, 256, 128)
_MIN_VMEM_LIMIT = 4 * 1024 * 1024
_MAX_VMEM_LIMIT = 96 * 1024 * 1024
# Above this total size, force >=2 grid blocks so v7x megacore can shard.
_MEGACORE_SPLIT_BYTES = 2 * 1024 * 1024


def _target_block_bytes():
    """Per-input block budget, tuned per TPU generation (HBM BW vs step overhead)."""
    try:
        kind = jax.devices()[0].device_kind.lower()
    except Exception:
        kind = ""
    if "v5 lite" in kind or "v5lite" in kind or "v5e" in kind:
        return 2 * 1024 * 1024   # ~0.82 TB/s: 2 MiB already amortizes step overhead
    if "v7" in kind:
        return 5 * 1024 * 1024   # ~3.2 TB/s: bigger blocks; 8x5+2 = 42 MiB < 64 MiB VMEM
    return 4 * 1024 * 1024       # v6e / default (128 MiB VMEM, no constraint)


def basic_module_forward(x, h, *, target_block_bytes=None):
    """Pallas equivalent of BasicModule.forward: returns (x + h, x - h)."""
    assert x.shape == h.shape and x.dtype == h.dtype
    orig_shape = x.shape

    if x.size == 0:
        return x + h, x - h

    n = x.size
    itemsize = jnp.dtype(x.dtype).itemsize
    row_align = max(8, 32 // itemsize)       # sublane packing: 8/f32, 16/bf16, 32/int8
    target = target_block_bytes or _target_block_bytes()

    # --- Lane-dense re-tiling. Prefer a full flatten into a wide (rows, W)
    # view so every store is unmasked and every DMA row is long+contiguous;
    # otherwise keep the logical last dim as lanes and rely on Pallas
    # edge-block masking (no jnp.pad / slice => no extra HBM passes).
    x2 = h2 = None
    for w in _FLATTEN_WIDTHS:
        if n % w == 0:
            x2 = x.reshape(n // w, w)
            h2 = h.reshape(n // w, w)
            break
    if x2 is None:
        if x.ndim <= 1:
            x2 = x.reshape(1, -1)
            h2 = h.reshape(1, -1)
        else:
            x2 = x.reshape(-1, x.shape[-1])
            h2 = h.reshape(-1, h.shape[-1])
    rows, cols = x2.shape

    # --- Column tile: use the full width as a single contiguous column tile
    # whenever an aligned row strip fits the block budget; otherwise split
    # into lane-dense multiples of 128 (edge block masked).
    max_cols = max(128, (target // (row_align * itemsize)) // 128 * 128)
    tile_cols = cols if cols <= max_cols else max_cols

    # --- Row tile from the block-byte budget, sublane-aligned per dtype.
    rows_for_target = max(row_align, target // (tile_cols * itemsize))
    tile_rows = _round_up(rows_for_target, row_align)
    if tile_rows >= rows:
        tile_rows = rows  # single full-height block (full dim is always legal)

    grid_rows = _cdiv(rows, tile_rows)
    grid_cols = _cdiv(cols, tile_cols)

    # --- Megacore: guarantee >=2 grid blocks for non-tiny tensors so both
    # v7x TensorCores (and DMA engines) get work. No-op cost on v5e/v6e.
    if grid_rows * grid_cols == 1 and n * itemsize > _MEGACORE_SPLIT_BYTES:
        if rows >= 2 * row_align:
            tile_rows = _round_up(_cdiv(rows, 2), row_align)
            grid_rows = _cdiv(rows, tile_rows)
        elif cols >= 256:
            tile_cols = _round_up(_cdiv(cols, 2), 128)
            grid_cols = _cdiv(cols, tile_cols)

    spec = pl.BlockSpec((tile_rows, tile_cols), lambda i, j: (i, j))

    # Explicit VMEM budget: 2 inputs + 2 outputs, double-buffered ≈ 8x block.
    block_bytes = tile_rows * tile_cols * itemsize
    vmem_limit = 8 * block_bytes + 2 * 1024 * 1024
    vmem_limit = max(_MIN_VMEM_LIMIT, min(_MAX_VMEM_LIMIT, vmem_limit))

    cost = pl.CostEstimate(
        flops=2 * n,                       # one add + one sub per element
        transcendentals=0,
        bytes_accessed=4 * n * itemsize,   # 2 reads + 2 writes (roofline floor)
    )

    accum2, sub2 = pl.pallas_call(
        _basic_kernel,
        out_shape=(
            jax.ShapeDtypeStruct((rows, cols), x2.dtype),
            jax.ShapeDtypeStruct((rows, cols), x2.dtype),
        ),
        grid=(grid_rows, grid_cols),
        in_specs=[spec, spec],
        out_specs=(spec, spec),
        compiler_params=pltpu.CompilerParams(
            dimension_semantics=("parallel", "parallel"),
            vmem_limit_bytes=vmem_limit,
        ),
        cost_estimate=cost,
    )(x2, h2)

    return accum2.reshape(orig_shape), sub2.reshape(orig_shape)


if __name__ == "__main__":
    key = jax.random.PRNGKey(0)
    kx, kh = jax.random.split(key)

    def _check(shape, dtype=jnp.float32, **kw):
        xv = jax.random.normal(kx, shape, dtype=jnp.float32).astype(dtype)
        hv = jax.random.normal(kh, shape, dtype=jnp.float32).astype(dtype)
        a, s = basic_module_forward(xv, hv, **kw)
        jax.block_until_ready((a, s))
        assert a.shape == xv.shape and s.shape == xv.shape
        assert jnp.allclose(a, xv + hv, atol=1e-6, rtol=1e-6), f"accum mismatch {shape} {dtype}"
        assert jnp.allclose(s, xv - hv, atol=1e-6, rtol=1e-6), f"sub_accum mismatch {shape} {dtype}"

    # Small lane-aligned case: flattens to a single lane-dense (1, 2048) block.
    _check((16, 128))
    # Misaligned small case: no pad/slice, single full-array block, masked edges.
    _check((37, 200))
    # Multi-block ragged-row path (small budget forces a 19x1 grid w/ partial edge).
    _check((1030, 333), target_block_bytes=64 * 1024)
    # Ragged-column path (grid_cols > 1 with a partial edge column block).
    _check((16, 2100), target_block_bytes=64 * 1024)
    # Sub-32-bit dtype: dtype-aware sublane alignment (16 rows for bf16).
    _check((64, 256), dtype=jnp.bfloat16)

    print("KERNEL_OK")
</pallas_src>

<mosaic_0001>
module attributes {stable_mosaic.version = 11 : i64} {
  func.func @_basic_kernel(%arg0: i32, %arg1: i32, %arg2: memref<1x2048xf32, #tpu.memory_space<vmem>>, %arg3: memref<1x2048xf32, #tpu.memory_space<vmem>>, %arg4: memref<1x2048xf32, #tpu.memory_space<vmem>>, %arg5: memref<1x2048xf32, #tpu.memory_space<vmem>>) attributes {dimension_semantics = [#tpu.dimension_semantics<parallel>, #tpu.dimension_semantics<parallel>], iteration_bounds = array<i64: 1, 1>, scalar_prefetch = 0 : i64, scratch_operands = 0 : i64, tpu.core_type = #tpu.core_type<tc>, window_params = [{transform_indices = @transform_0, window_bounds = array<i64: 1, 2048>}, {transform_indices = @transform_1, window_bounds = array<i64: 1, 2048>}, {transform_indices = @transform_2, window_bounds = array<i64: 1, 2048>}, {transform_indices = @transform_3, window_bounds = array<i64: 1, 2048>}]} {
    %c0 = arith.constant 0 : index
    %c0_0 = arith.constant 0 : index
    %0 = vector.load %arg2[%c0, %c0_0] : memref<1x2048xf32, #tpu.memory_space<vmem>>, vector<1x2048xf32>
    %c0_1 = arith.constant 0 : index
    %c0_2 = arith.constant 0 : index
    %1 = vector.load %arg3[%c0_1, %c0_2] : memref<1x2048xf32, #tpu.memory_space<vmem>>, vector<1x2048xf32>
    %2 = arith.addf %0, %1 : vector<1x2048xf32>
    %c0_3 = arith.constant 0 : index
    %c0_4 = arith.constant 0 : index
    %3 = vector.load %arg4[%c0_3, %c0_4] : memref<1x2048xf32, #tpu.memory_space<vmem>>, vector<1x2048xf32>
    tpu.vector_store %arg4[%c0_3, %c0_4], %2 {strides = array<i32>} : memref<1x2048xf32, #tpu.memory_space<vmem>>, vector<1x2048xf32>,
    %4 = arith.subf %0, %1 : vector<1x2048xf32>
    %c0_5 = arith.constant 0 : index
    %c0_6 = arith.constant 0 : index
    %5 = vector.load %arg5[%c0_5, %c0_6] : memref<1x2048xf32, #tpu.memory_space<vmem>>, vector<1x2048xf32>
    tpu.vector_store %arg5[%c0_5, %c0_6], %4 {strides = array<i32>} : memref<1x2048xf32, #tpu.memory_space<vmem>>, vector<1x2048xf32>,
    return
  }
  func.func @transform_0(%arg0: i32, %arg1: i32) -> (i32, i32) {
    %c0_i32 = arith.constant 0 : i32
    return %arg0, %arg1 : i32, i32
  }
  func.func @transform_1(%arg0: i32, %arg1: i32) -> (i32, i32) {
    %c0_i32 = arith.constant 0 : i32
    return %arg0, %arg1 : i32, i32
  }
  func.func @transform_2(%arg0: i32, %arg1: i32) -> (i32, i32) {
    %c0_i32 = arith.constant 0 : i32
    return %arg0, %arg1 : i32, i32
  }
  func.func @transform_3(%arg0: i32, %arg1: i32) -> (i32, i32) {
    %c0_i32 = arith.constant 0 : i32
    return %arg0, %arg1 : i32, i32
  }
}

</mosaic_0001>

<llo_original>
// kernel: tpu_custom_call.1
$region0: #{tpu_custom_call.1}
  #allocation0 [shape = 'u32[]', space=smem, size = 0x4, offset = 0x4, fixed_abs, tag = 'smem constant byte address 0x4 - core index']
  #allocation1 [shape = 'u32[144,128]{1,0:T(1,128)}', space=vmem, size = 0x12000, scoped, tag = 'internal scratch']
  %s0 = inlined_call_operand.hbm [shape: f32[1,2048], index: 0, kind: input, shape index: {}]
  %s1 = inlined_call_operand.hbm [shape: f32[1,2048], index: 1, kind: input, shape index: {}]
  %s2 = inlined_call_operand.hbm [shape: f32[1,2048], index: 2, kind: output, shape index: {0}]
  %s3 = inlined_call_operand.hbm [shape: f32[1,2048], index: 3, kind: output, shape index: {1}]
  %4 = xla_tuple %s2, %s3
  %s5 = sld [smem:[#allocation0]]
  $region34: #{tpu_custom_call.1} parent=0
    _
  %s7 = ssub.s32 1, %s5
  %s8 = scalar_select 0, %s7, %s5
  $region1: #{tpu_custom_call.1} parent=0
    #allocation2 [shape = 'u8[8192]{0}', space=vmem, size = 0x2000, scoped, tag = 'input window, operand 0, single buffered']
    #allocation3 [shape = 's32[1]{0}', space=sflag, size = 0x4, scoped, tag = 'scoped memory for tpu_custom_call.1']
    #allocation4 [shape = 's32[1]{0}', space=sflag, size = 0x4, scoped, tag = 'scoped memory for tpu_custom_call.1']
    #allocation5 [shape = 'u8[8192]{0}', space=vmem, size = 0x2000, scoped, tag = 'input window, operand 1, single buffered']
    #allocation6 [shape = 's32[1]{0}', space=sflag, size = 0x4, scoped, tag = 'scoped memory for tpu_custom_call.1']
    #allocation7 [shape = 'u8[8192]{0}', space=vmem, size = 0x2000, scoped, tag = 'output window, operand 0, single buffered']
    #allocation8 [shape = 'u8[8192]{0}', space=vmem, size = 0x2000, scoped, tag = 'output window, operand 1, single buffered']
    #allocation9 [shape = 's32[1]{0}', space=sflag, size = 0x4, scoped, tag = 'scoped memory for tpu_custom_call.1']
    %9 = vsyncpa [#allocation3], 0
    %10 = vsyncpa [#allocation6], 0
    %11 = vsyncpa [#allocation4], 0
    %12 = vsyncpa [#allocation9], 0
    // Predicated region
    $region2: #{tpu_custom_call.1} parent=1 // pred_check
      _
    $region3: #{tpu_custom_call.1} parent=1 // pred_check_branch
      %14 = sbr.rel (0) target = $region5
    $region4: #{tpu_custom_call.1} parent=1 // pred_region
      %s16 = ssub.s32 256, 256
      %17 = vsyncadd [#allocation3], %s16
      %s19 = sshll.u32 [#allocation2], 4
      %s20 = int_to_ptr.vmem [resolvable:$true] %s19
      %22 = dma.hbm_to_vmem [thread:$0]  %s0, 256, %s20, [#allocation3]
    $region5: #{tpu_custom_call.1} parent=1 // pred_fallthru
      _
    // Predicated region
    $region6: #{tpu_custom_call.1} parent=1 // pred_check
      _
    $region7: #{tpu_custom_call.1} parent=1 // pred_check_branch
      %24 = sbr.rel (0) target = $region9
    $region8: #{tpu_custom_call.1} parent=1 // pred_region
      %s26 = ssub.s32 256, 256
      %27 = vsyncadd [#allocation6], %s26
      %s29 = sshll.u32 [#allocation5], 4
      %s30 = int_to_ptr.vmem [resolvable:$true] %s29
      %32 = dma.hbm_to_vmem [thread:$0]  %s1, 256, %s30, [#allocation6]
    $region9: #{tpu_custom_call.1} parent=1 // pred_fallthru
      _
    // Predicated region
    $region10: #{tpu_custom_call.1} parent=1 // pred_check
      _
    $region11: #{tpu_custom_call.1} parent=1 // pred_check_branch
      %34 = sbr.rel (0) target = $region13
    $region12: #{tpu_custom_call.1} parent=1 // pred_region
      %35 = dma.done [#allocation3], 256
    $region13: #{tpu_custom_call.1} parent=1 // pred_fallthru
      _
    // Predicated region
    $region14: #{tpu_custom_call.1} parent=1 // pred_check
      _
    $region15: #{tpu_custom_call.1} parent=1 // pred_check_branch
      %37 = sbr.rel (0) target = $region17
    $region16: #{tpu_custom_call.1} parent=1 // pred_region
      %38 = dma.done [#allocation6], 256
    $region17: #{tpu_custom_call.1} parent=1 // pred_fallthru
      _
    %v39 = vld [vmem:[#allocation2] sm:$0xff]
    %v40 = vld [vmem:[#allocation2 + $0x8] sm:$0xff]
    %v41 = vld [vmem:[#allocation5] sm:$0xff]
    %v42 = vld [vmem:[#allocation5 + $0x8] sm:$0xff]
    %v43 = vadd.f32 %v39, %v41
    %v44 = vadd.f32 %v40, %v42
    %45 = vst [vmem:[#allocation7] sm:$0xff] %v43
    %46 = vst [vmem:[#allocation7 + $0x8] sm:$0xff] %v44
    %v47 = vsub.f32 %v39, %v41
    %v48 = vsub.f32 %v40, %v42
    %49 = vst [vmem:[#allocation8] sm:$0xff] %v47
    %50 = vst [vmem:[#allocation8 + $0x8] sm:$0xff] %v48
    // Predicated region
    $region18: #{tpu_custom_call.1} parent=1 // pred_check
      _
    $region19: #{tpu_custom_call.1} parent=1 // pred_check_branch
      %52 = sbr.rel (0) target = $region21
    $region20: #{tpu_custom_call.1} parent=1 // pred_region
      %s54 = ssub.s32 256, 256
      %55 = vsyncadd [#allocation4], %s54
      %s57 = sshll.u32 [#allocation7], 4
      %s58 = int_to_ptr.vmem [resolvable:$true] %s57
      %60 = dma.vmem_to_hbm [thread:$0]  %s58, 256, %s2, [#allocation4]
    $region21: #{tpu_custom_call.1} parent=1 // pred_fallthru
      _
    // Predicated region
    $region22: #{tpu_custom_call.1} parent=1 // pred_check
      _
    $region23: #{tpu_custom_call.1} parent=1 // pred_check_branch
      %62 = sbr.rel (0) target = $region25
    $region24: #{tpu_custom_call.1} parent=1 // pred_region
      %s64 = ssub.s32 256, 256
      %65 = vsyncadd [#allocation9], %s64
      %s67 = sshll.u32 [#allocation8], 4
      %s68 = int_to_ptr.vmem [resolvable:$true] %s67
      %70 = dma.vmem_to_hbm [thread:$0]  %s68, 256, %s3, [#allocation9]
    $region25: #{tpu_custom_call.1} parent=1 // pred_fallthru
      _
    // Predicated region
    $region26: #{tpu_custom_call.1} parent=1 // pred_check
      _
    $region27: #{tpu_custom_call.1} parent=1 // pred_check_branch
      %72 = sbr.rel (0) target = $region29
    $region28: #{tpu_custom_call.1} parent=1 // pred_region
      %73 = dma.done [#allocation4], 256
    $region29: #{tpu_custom_call.1} parent=1 // pred_fallthru
      _
    // Predicated region
    $region30: #{tpu_custom_call.1} parent=1 // pred_check
      _
    $region31: #{tpu_custom_call.1} parent=1 // pred_check_branch
      %75 = sbr.rel (0) target = $region33
    $region32: #{tpu_custom_call.1} parent=1 // pred_region
      %76 = dma.done [#allocation9], 256
    $region33: #{tpu_custom_call.1} parent=1 // pred_fallthru
      _
    %77 = vsyncpa [#allocation3], 1
    %78 = vsyncpa [#allocation6], 1
    %79 = vsyncpa [#allocation4], 1
    %80 = vsyncpa [#allocation9], 1

</llo_original>
